<compile_context>
chip_gen: v5e
topology: v5e:2x2
jax: 0.10.0
libtpu: 0.0.40
codegen_flags: <defaults>
</compile_context>

<pallas_src>
import jax
import jax.numpy as jnp
from jax.experimental import pallas as pl
from jax.experimental.pallas import tpu as pltpu


def _make_laplace3d_kernel(h, w):
    """Build the kernel for blocks of shape (TB, D, H*W)."""
    hw = h * w

    def kernel(x_ref, o_ref):
        x = x_ref[...].astype(jnp.float32)          # (TB, D, HW)
        tb, d, _ = x.shape

        acc = -6.0 * x

        # D neighbours: shift along axis 1 (the sublane axis of the block),
        # zero-filled at the d=0 / d=D-1 borders.
        if d > 1:
            zd = jnp.zeros((tb, 1, hw), jnp.float32)
            acc += jnp.concatenate([x[:, 1:, :], zd], axis=1)   # x[d+1]
            acc += jnp.concatenate([zd, x[:, :-1, :]], axis=1)  # x[d-1]

        # H neighbours: +-W shift along the collapsed lane axis.  The W-wide
        # zero fill lands exactly on the h=H-1 / h=0 rows, so no mask needed.
        if h > 1:
            zrow = jnp.zeros((tb, d, w), jnp.float32)
            acc += jnp.concatenate([x[:, :, w:], zrow], axis=2)        # x[h+1]
            acc += jnp.concatenate([zrow, x[:, :, :hw - w]], axis=2)   # x[h-1]

        # W neighbours: +-1 shift along the collapsed lane axis; zero the
        # positions whose shift would wrap across an H-row boundary.
        if w > 1:
            col = jax.lax.broadcasted_iota(jnp.int32, x.shape, 2) % w
            z1 = jnp.zeros((tb, d, 1), jnp.float32)
            plus = jnp.concatenate([x[:, :, 1:], z1], axis=2)          # x[w+1]
            minus = jnp.concatenate([z1, x[:, :, :hw - 1]], axis=2)    # x[w-1]
            acc += jnp.where(col == w - 1, 0.0, plus)
            acc += jnp.where(col == 0, 0.0, minus)

        o_ref[...] = acc.astype(o_ref.dtype)

    return kernel


def _round_up(v, m):
    return -(-v // m) * m


@jax.jit
def laplace3d(x):
    """Forward of pywick's Laplace3D: fixed 3x3x3 Laplacian conv, padding=1."""
    n, c, d, h, w = x.shape
    if c != 1:
        raise ValueError("Laplace3D expects single-channel input (N,1,D,H,W)")
    hw = h * w
    xr = x.reshape(n, d, hw)          # free in HBM: contiguous, lane-dense

    # Images per grid step: ~2 MiB of f32 working set per block using the
    # physical (8,128)-tiled footprint of the (D, HW) tail dims, so the
    # double-buffered in/out blocks plus f32 intermediates stay well inside
    # scoped VMEM on v5e/v6e (128 MiB) and v7x (64 MiB).
    per_img_f32 = _round_up(d, 8) * _round_up(hw, 128) * 4
    budget = 2 * 1024 * 1024
    tb = int(max(1, min(n, budget // per_img_f32)))
    # TODO(synk): a single (D,H,W) volume larger than VMEM would need spatial
    # tiling with halo exchange; not needed for conv-weight / small-stack sizes.

    grid = (pl.cdiv(n, tb),)          # ragged final block is masked by Pallas

    out = pl.pallas_call(
        _make_laplace3d_kernel(h, w),
        out_shape=jax.ShapeDtypeStruct((n, d, hw), x.dtype),
        grid_spec=pltpu.PrefetchScalarGridSpec(
            num_scalar_prefetch=0,
            grid=grid,
            in_specs=[pl.BlockSpec((tb, d, hw), lambda i: (i, 0, 0))],
            out_specs=pl.BlockSpec((tb, d, hw), lambda i: (i, 0, 0)),
        ),
        compiler_params=pltpu.CompilerParams(
            # Blocks are fully independent -> megacore / both v7x TCs split N.
            dimension_semantics=("parallel",),
            vmem_limit_bytes=32 * 1024 * 1024,
        ),
    )(xr)

    return out.reshape(n, 1, d, h, w)


# --- pure-JAX reference (lax 3D conv with the pywick laplace3d filter) -------

def _laplace3d_filter():
    l = jnp.zeros((3, 3, 3), jnp.float32)
    l = l.at[1, 1, 1].set(-6.0)
    l = l.at[1, 1, 2].set(1.0)
    l = l.at[1, 1, 0].set(1.0)
    l = l.at[1, 0, 1].set(1.0)
    l = l.at[1, 2, 1].set(1.0)
    l = l.at[0, 1, 1].set(1.0)
    l = l.at[2, 1, 1].set(1.0)
    return l


def _reference_laplace3d(x):
    w = _laplace3d_filter()[None, None]          # OIDHW
    y = jax.lax.conv_general_dilated(
        x.astype(jnp.float32), w, window_strides=(1, 1, 1),
        padding=((1, 1), (1, 1), (1, 1)),
        dimension_numbers=("NCDHW", "OIDHW", "NCDHW"))
    return y.astype(x.dtype)


if __name__ == "__main__":
    key = jax.random.PRNGKey(0)
    k1, k2 = jax.random.split(key)

    # Primary case: small stack of single-channel volumes, (N, C=1, D, H, W).
    x1 = jax.random.normal(k1, (2, 1, 8, 16, 16), dtype=jnp.float32)
    y1 = jax.block_until_ready(laplace3d(x1))
    y1_ref = jax.block_until_ready(_reference_laplace3d(x1))
    assert y1.shape == x1.shape, (y1.shape, x1.shape)
    assert jnp.allclose(y1, y1_ref, rtol=1e-4, atol=1e-4), float(
        jnp.max(jnp.abs(y1 - y1_ref)))

    # Ragged / non-power-of-two spatial dims exercise the wrap-mask path.
    x2 = jax.random.normal(k2, (3, 1, 4, 5, 12), dtype=jnp.float32)
    y2 = jax.block_until_ready(laplace3d(x2))
    y2_ref = jax.block_until_ready(_reference_laplace3d(x2))
    assert y2.shape == x2.shape, (y2.shape, x2.shape)
    assert jnp.allclose(y2, y2_ref, rtol=1e-4, atol=1e-4), float(
        jnp.max(jnp.abs(y2 - y2_ref)))

    print("KERNEL_OK")
</pallas_src>

<mosaic_0001>
module attributes {stable_mosaic.version = 11 : i64} {
  func.func @kernel(%arg0: i32, %arg1: memref<2x8x256xf32, #tpu.memory_space<vmem>>, %arg2: memref<2x8x256xf32, #tpu.memory_space<vmem>>) attributes {dimension_semantics = [#tpu.dimension_semantics<parallel>], iteration_bounds = array<i64: 1>, scalar_prefetch = 0 : i64, scratch_operands = 0 : i64, tpu.core_type = #tpu.core_type<tc>, window_params = [{transform_indices = @transform_0, window_bounds = array<i64: 2, 8, 256>}, {transform_indices = @transform_1, window_bounds = array<i64: 2, 8, 256>}]} {
    %c0 = arith.constant 0 : index
    %c0_0 = arith.constant 0 : index
    %c0_1 = arith.constant 0 : index
    %0 = vector.load %arg1[%c0, %c0_0, %c0_1] : memref<2x8x256xf32, #tpu.memory_space<vmem>>, vector<2x8x256xf32>
    %cst = arith.constant -6.000000e+00 : f32
    %1 = vector.broadcast %cst : f32 to vector<2x8x256xf32>
    %2 = arith.mulf %1, %0 : vector<2x8x256xf32>
    %cst_2 = arith.constant 0.000000e+00 : f32
    %3 = vector.broadcast %cst_2 : f32 to vector<2x1x256xf32>
    %4 = vector.extract_strided_slice %0 {offsets = [0, 1, 0], sizes = [2, 7, 256], strides = [1, 1, 1]} : vector<2x8x256xf32> to vector<2x7x256xf32>
    %5 = tpu.concatenate %4, %3 in 1 : vector<2x7x256xf32>, vector<2x1x256xf32> -> vector<2x8x256xf32>
    %6 = arith.addf %2, %5 : vector<2x8x256xf32>
    %7 = vector.extract_strided_slice %0 {offsets = [0, 0, 0], sizes = [2, 7, 256], strides = [1, 1, 1]} : vector<2x8x256xf32> to vector<2x7x256xf32>
    %8 = tpu.concatenate %3, %7 in 1 : vector<2x1x256xf32>, vector<2x7x256xf32> -> vector<2x8x256xf32>
    %9 = arith.addf %6, %8 : vector<2x8x256xf32>
    %cst_3 = arith.constant 0.000000e+00 : f32
    %10 = vector.broadcast %cst_3 : f32 to vector<2x8x16xf32>
    %11 = vector.extract_strided_slice %0 {offsets = [0, 0, 16], sizes = [2, 8, 240], strides = [1, 1, 1]} : vector<2x8x256xf32> to vector<2x8x240xf32>
    %12 = tpu.concatenate %11, %10 in 2 : vector<2x8x240xf32>, vector<2x8x16xf32> -> vector<2x8x256xf32>
    %13 = arith.addf %9, %12 : vector<2x8x256xf32>
    %14 = vector.extract_strided_slice %0 {offsets = [0, 0, 0], sizes = [2, 8, 240], strides = [1, 1, 1]} : vector<2x8x256xf32> to vector<2x8x240xf32>
    %15 = tpu.concatenate %10, %14 in 2 : vector<2x8x16xf32>, vector<2x8x240xf32> -> vector<2x8x256xf32>
    %16 = arith.addf %13, %15 : vector<2x8x256xf32>
    %17 = tpu.iota {dimensions = array<i32: 2>} : vector<2x8x256xi32>
    %c16_i32 = arith.constant 16 : i32
    %c0_i32 = arith.constant 0 : i32
    %18 = arith.cmpi eq, %c16_i32, %c0_i32 : i32
    %c1_i32 = arith.constant 1 : i32
    %19 = arith.select %18, %c1_i32, %c16_i32 : i32
    %20 = vector.broadcast %19 : i32 to vector<2x8x256xi32>
    %21 = arith.remsi %17, %20 : vector<2x8x256xi32>
    %c0_i32_4 = arith.constant 0 : i32
    %22 = vector.broadcast %c0_i32_4 : i32 to vector<2x8x256xi32>
    %23 = arith.cmpi ne, %21, %22 : vector<2x8x256xi32>
    %c0_i32_5 = arith.constant 0 : i32
    %24 = vector.broadcast %c0_i32_5 : i32 to vector<2x8x256xi32>
    %25 = arith.cmpi slt, %21, %24 : vector<2x8x256xi32>
    %c0_i32_6 = arith.constant 0 : i32
    %26 = arith.cmpi slt, %19, %c0_i32_6 : i32
    %27 = vector.broadcast %26 : i1 to vector<2x8x256xi1>
    %28 = vector.broadcast %27 : vector<2x8x256xi1> to vector<2x8x256xi1>
    %29 = arith.xori %25, %28 : vector<2x8x256xi1>
    %30 = arith.andi %29, %23 : vector<2x8x256xi1>
    %31 = vector.broadcast %19 : i32 to vector<2x8x256xi32>
    %32 = arith.addi %21, %31 : vector<2x8x256xi32>
    %33 = arith.select %30, %32, %21 : vector<2x8x256xi1>, vector<2x8x256xi32>
    %cst_7 = arith.constant 0.000000e+00 : f32
    %34 = vector.broadcast %cst_7 : f32 to vector<2x8x1xf32>
    %35 = vector.extract_strided_slice %0 {offsets = [0, 0, 1], sizes = [2, 8, 255], strides = [1, 1, 1]} : vector<2x8x256xf32> to vector<2x8x255xf32>
    %36 = tpu.concatenate %35, %34 in 2 : vector<2x8x255xf32>, vector<2x8x1xf32> -> vector<2x8x256xf32>
    %37 = vector.extract_strided_slice %0 {offsets = [0, 0, 0], sizes = [2, 8, 255], strides = [1, 1, 1]} : vector<2x8x256xf32> to vector<2x8x255xf32>
    %38 = tpu.concatenate %34, %37 in 2 : vector<2x8x1xf32>, vector<2x8x255xf32> -> vector<2x8x256xf32>
    %c15_i32 = arith.constant 15 : i32
    %39 = vector.broadcast %c15_i32 : i32 to vector<2x8x256xi32>
    %40 = arith.cmpi eq, %33, %39 : vector<2x8x256xi32>
    %cst_8 = arith.constant 0.000000e+00 : f32
    %41 = vector.broadcast %cst_8 : f32 to vector<2x8x256xf32>
    %42 = arith.select %40, %41, %36 : vector<2x8x256xi1>, vector<2x8x256xf32>
    %43 = arith.addf %16, %42 : vector<2x8x256xf32>
    %c0_i32_9 = arith.constant 0 : i32
    %44 = vector.broadcast %c0_i32_9 : i32 to vector<2x8x256xi32>
    %45 = arith.cmpi eq, %33, %44 : vector<2x8x256xi32>
    %cst_10 = arith.constant 0.000000e+00 : f32
    %46 = vector.broadcast %cst_10 : f32 to vector<2x8x256xf32>
    %47 = arith.select %45, %46, %38 : vector<2x8x256xi1>, vector<2x8x256xf32>
    %48 = arith.addf %43, %47 : vector<2x8x256xf32>
    %c0_11 = arith.constant 0 : index
    %c0_12 = arith.constant 0 : index
    %c0_13 = arith.constant 0 : index
    %49 = vector.load %arg2[%c0_11, %c0_12, %c0_13] : memref<2x8x256xf32, #tpu.memory_space<vmem>>, vector<2x8x256xf32>
    tpu.vector_store %arg2[%c0_11, %c0_12, %c0_13], %48 {strides = array<i32>} : memref<2x8x256xf32, #tpu.memory_space<vmem>>, vector<2x8x256xf32>,
    return
  }
  func.func @transform_0(%arg0: i32) -> (i32, i32, i32) {
    %c0_i32 = arith.constant 0 : i32
    %c0_i32_0 = arith.constant 0 : i32
    %c0_i32_1 = arith.constant 0 : i32
    return %arg0, %c0_i32, %c0_i32_0 : i32, i32, i32
  }
  func.func @transform_1(%arg0: i32) -> (i32, i32, i32) {
    %c0_i32 = arith.constant 0 : i32
    %c0_i32_0 = arith.constant 0 : i32
    %c0_i32_1 = arith.constant 0 : i32
    return %arg0, %c0_i32, %c0_i32_0 : i32, i32, i32
  }
}

</mosaic_0001>

<llo_original>
// kernel: laplace3d.1
$region0: #{laplace3d.1}
  #allocation0 [shape = 'u32[]', space=smem, size = 0x4, offset = 0x4, fixed_abs, tag = 'smem constant byte address 0x4 - core index']
  #allocation1 [shape = 'u32[72,128]{1,0:T(1,128)}', space=vmem, size = 0x9000, scoped, tag = 'internal scratch']
  %s0 = inlined_call_operand.vmem [shape: f32[2,8,256], index: 0, kind: input, shape index: {}]
  %s1 = inlined_call_operand.vmem [shape: f32[2,8,256], index: 1, kind: output, shape index: {}]
  %s2 = sld [smem:[#allocation0]]
  $region14: #{laplace3d.1} parent=0
    _
  %s4 = ssub.s32 1, %s2
  %s5 = scalar_select 0, %s4, %s2
  // Predicated region
  $region2: #{laplace3d.1} parent=0 // pred_check
    _
  $region3: #{laplace3d.1} parent=0 // pred_check_branch
    %7 = sbr.rel (0) target = $region5
  $region4: #{laplace3d.1} parent=0 // pred_region
    _
  $region5: #{laplace3d.1} parent=0 // pred_fallthru
    _
  %v8 = vld [vmem:[%s0] sm:$0xff]
  %v9 = vld [vmem:[%s0 + $0x8] sm:$0xff]
  %v10 = vld [vmem:[%s0 + $0x10] sm:$0xff]
  %v11 = vld [vmem:[%s0 + $0x18] sm:$0xff]
  %v12 = vmul.f32 %v8, -6.0
  %v13 = vmul.f32 %v9, -6.0
  %v14 = vmul.f32 %v10, -6.0
  %v15 = vmul.f32 %v11, -6.0
  %v20 = vrot.slane %v8, 1
  %v21 = vrot.slane %v9, 1
  %v22 = vrot.slane %v10, 1
  %v23 = vrot.slane %v11, 1
  %vm28 = vcmask 1046528
  %v29 = vsel %vm28, %v20, 0.0
  %v30 = vsel %vm28, %v21, 0.0
  %v31 = vsel %vm28, %v22, 0.0
  %v32 = vsel %vm28, %v23, 0.0
  %v33 = vadd.f32 %v12, %v29
  %v34 = vadd.f32 %v13, %v30
  %v35 = vadd.f32 %v14, %v31
  %v36 = vadd.f32 %v15, %v32
  %v37 = vrot.slane %v8, 7
  %v38 = vrot.slane %v9, 7
  %v39 = vrot.slane %v10, 7
  %v40 = vrot.slane %v11, 7
  %vm45 = vcmask 1040384
  %v46 = vsel %vm45, 0.0, %v37
  %v47 = vsel %vm45, 0.0, %v38
  %v48 = vsel %vm45, 0.0, %v39
  %v49 = vsel %vm45, 0.0, %v40
  %v50 = vadd.f32 %v33, %v46
  %v51 = vadd.f32 %v34, %v47
  %v52 = vadd.f32 %v35, %v48
  %v53 = vadd.f32 %v36, %v49
  %54 = vrot.lane.b32.xlu0 %v8, 112
  %v55 = vpop.permute.xlu0 %54
  %56 = vrot.lane.b32.xlu0 %v9, 112
  %v57 = vpop.permute.xlu0 %56
  %58 = vrot.lane.b32.xlu0 %v10, 112
  %v59 = vpop.permute.xlu0 %58
  %60 = vrot.lane.b32.xlu0 %v11, 112
  %v61 = vpop.permute.xlu0 %60
  %vm62 = vcmask 916480
  %v63 = vsel %vm62, %v55, %v57
  %v64 = vsel %vm62, %v59, %v61
  %v69 = vsel %vm62, %v57, 0.0
  %v70 = vsel %vm62, %v61, 0.0
  %v71 = vadd.f32 %v50, %v63
  %v72 = vadd.f32 %v51, %v69
  %v73 = vadd.f32 %v52, %v64
  %v74 = vadd.f32 %v53, %v70
  %75 = vrot.lane.b32.xlu0 %v8, 16
  %v76 = vpop.permute.xlu0 %75
  %77 = vrot.lane.b32.xlu0 %v9, 16
  %v78 = vpop.permute.xlu0 %77
  %79 = vrot.lane.b32.xlu0 %v10, 16
  %v80 = vpop.permute.xlu0 %79
  %81 = vrot.lane.b32.xlu0 %v11, 16
  %v82 = vpop.permute.xlu0 %81
  %vm83 = vcmask 130048
  %v84 = vsel %vm83, %v76, %v78
  %v85 = vsel %vm83, %v80, %v82
  %v90 = vsel %vm83, 0.0, %v76
  %v91 = vsel %vm83, 0.0, %v80
  %v92 = vadd.f32 %v71, %v90
  %v93 = vadd.f32 %v72, %v84
  %v94 = vadd.f32 %v73, %v91
  %v95 = vadd.f32 %v74, %v85
  %v96 = vlaneseq
  %v97 = vand.u32 %v96, 127
  %v98 = vadd.s32 %v97, 128
  %vm99 = vcmp.lt.s32.totalorder %v97, 0
  %v100 = vsub.s32 0, %v97
  %v101 = vsel %vm99, %v100, %v97
  %v102 = vshrl.u32 %v101, 4
  %v103 = vand.u32 %v101, 15
  %v104 = vsub.s32 0, %v103
  %v105 = vsel %vm99, %v104, %v103
  %vm106 = vcmp.lt.s32.totalorder %v98, 0
  %v107 = vsub.s32 0, %v98
  %v108 = vsel %vm106, %v107, %v98
  %v109 = vshrl.u32 %v108, 4
  %v110 = vand.u32 %v108, 15
  %v111 = vsub.s32 0, %v110
  %v112 = vsel %vm106, %v111, %v110
  %vm113 = vcmp.ne.s32.totalorder %v105, 0
  %vm114 = vcmp.ne.s32.totalorder %v112, 0
  %vm115 = vcmp.lt.s32.totalorder %v105, 0
  %vm116 = vcmp.lt.s32.totalorder %v112, 0
  %vm117 = vmand %vm115, %vm113
  %vm118 = vmand %vm116, %vm114
  %v119 = vadd.s32 %v105, 16
  %v120 = vadd.s32 %v112, 16
  %v121 = vsel %vm117, %v119, %v105
  %v122 = vsel %vm118, %v120, %v112
  %123 = vrot.lane.b32.xlu0 %v8, 127
  %v124 = vpop.permute.xlu0 %123
  %125 = vrot.lane.b32.xlu0 %v9, 127
  %v126 = vpop.permute.xlu0 %125
  %127 = vrot.lane.b32.xlu0 %v10, 127
  %v128 = vpop.permute.xlu0 %127
  %129 = vrot.lane.b32.xlu0 %v11, 127
  %v130 = vpop.permute.xlu0 %129
  %vm131 = vcmask 1039360
  %v132 = vsel %vm131, %v124, %v126
  %v133 = vsel %vm131, %v128, %v130
  %v138 = vsel %vm131, %v126, 0.0
  %v139 = vsel %vm131, %v130, 0.0
  %140 = vrot.lane.b32.xlu0 %v8, 1
  %v141 = vpop.permute.xlu0 %140
  %142 = vrot.lane.b32.xlu0 %v9, 1
  %v143 = vpop.permute.xlu0 %142
  %144 = vrot.lane.b32.xlu0 %v10, 1
  %v145 = vpop.permute.xlu0 %144
  %146 = vrot.lane.b32.xlu0 %v11, 1
  %v147 = vpop.permute.xlu0 %146
  %vm148 = vcmask 7168
  %v149 = vsel %vm148, %v141, %v143
  %v150 = vsel %vm148, %v145, %v147
  %v155 = vsel %vm148, 0.0, %v141
  %v156 = vsel %vm148, 0.0, %v145
  %vm157 = vcmp.eq.s32.totalorder %v121, 15
  %vm158 = vcmp.eq.s32.totalorder %v122, 15
  %v159 = vsel %vm157, 0.0, %v132
  %v160 = vsel %vm158, 0.0, %v138
  %v161 = vsel %vm157, 0.0, %v133
  %v162 = vsel %vm158, 0.0, %v139
  %v163 = vadd.f32 %v92, %v159
  %v164 = vadd.f32 %v93, %v160
  %v165 = vadd.f32 %v94, %v161
  %v166 = vadd.f32 %v95, %v162
  %vm167 = vcmp.eq.s32.totalorder %v121, 0
  %vm168 = vcmp.eq.s32.totalorder %v122, 0
  %v169 = vsel %vm167, 0.0, %v155
  %v170 = vsel %vm168, 0.0, %v149
  %v171 = vsel %vm167, 0.0, %v156
  %v172 = vsel %vm168, 0.0, %v150
  %v173 = vadd.f32 %v163, %v169
  %v174 = vadd.f32 %v164, %v170
  %v175 = vadd.f32 %v165, %v171
  %v176 = vadd.f32 %v166, %v172
  %177 = vst [vmem:[%s1] sm:$0xff] %v173
  %178 = vst [vmem:[%s1 + $0x8] sm:$0xff] %v174
  %179 = vst [vmem:[%s1 + $0x10] sm:$0xff] %v175
  %180 = vst [vmem:[%s1 + $0x18] sm:$0xff] %v176
  // Predicated region
  $region6: #{laplace3d.1} parent=0 // pred_check
    _
  $region7: #{laplace3d.1} parent=0 // pred_check_branch
    %182 = sbr.rel (0) target = $region9
  $region8: #{laplace3d.1} parent=0 // pred_region
    _
  $region9: #{laplace3d.1} parent=0 // pred_fallthru
    _
  // Predicated region
  $region10: #{laplace3d.1} parent=0 // pred_check
    _
  $region11: #{laplace3d.1} parent=0 // pred_check_branch
    %184 = sbr.rel (0) target = $region13
  $region12: #{laplace3d.1} parent=0 // pred_region
    _
  $region13: #{laplace3d.1} parent=0 // pred_fallthru
    _

</llo_original>
